<compile_context>
chip_gen: v7x
topology: tpu7x:2x2x1
jax: 0.10.0
libtpu: 0.0.40
codegen_flags: <defaults>
</compile_context>

<pallas_src>
import numpy as np
import jax
import jax.numpy as jnp
from jax.experimental import pallas as pl
from jax.experimental.pallas import tpu as pltpu


# --------------------------------------------------------------------------- #
# Kernel
# --------------------------------------------------------------------------- #
def g2_update_kernel(e_i_ref, base_ref, w_ref, table_hbm_ref, out_ref):
    # e_i_ref:       (TI, D)  f32  E rows reduced over at this i step
    # base_ref:      (TJ, D)  f32  precomputed E[j] + sum_i R[j,i,:] for this j tile
    # w_ref:         (TI, TJ, D)   pre-transposed W slab for this (i, j) tile
    # table_hbm_ref: full table left in HBM; alias target only (rows [N_G2:] kept)
    # out_ref:       (TJ, D)  f32  rows [j*TJ,(j+1)*TJ) of the output table;
    #                resident across the i axis -> doubles as the accumulator.
    del table_hbm_ref  # never read; alias target only

    i = pl.program_id(1)

    @pl.when(i == 0)
    def _init():
        out_ref[...] = base_ref[...]

    e = e_i_ref[...].astype(jnp.float32)      # upcast the whole (TI, D) chunk once
    acc = out_ref[...]                        # (TJ, D) f32, resident across i
    for k in range(w_ref.shape[0]):           # static unroll, TI <= 32
        # leading-axis slice of W^T: contiguous, unmasked vregs; VPU mul-add.
        acc = acc + w_ref[k].astype(jnp.float32) * e[k:k + 1, :]
    out_ref[...] = acc


# --------------------------------------------------------------------------- #
# Tiling / VMEM sizing helpers
# --------------------------------------------------------------------------- #
def _vmem_budget_bytes():
    """Per-generation VMEM budget for tile sizing (conservative on v7x: 64 MiB/TC)."""
    try:
        info = pltpu.get_tpu_info()
        cap = getattr(info, "vmem_capacity_bytes", None)
        if cap:
            return int(cap * 0.6)
    except Exception:
        pass
    return 48 * 1024 * 1024  # safe default that fits v7x's 64 MiB per TensorCore


def _tile_vmem_bytes(tj, ti, d, w_itemsize):
    return (2 * ti * tj * d * w_itemsize   # W^T slab, double buffered
            + 2 * ti * d * 4               # E chunk stream (f32)
            + 2 * tj * d * 4               # base stream (f32)
            + 2 * tj * d * 4)              # resident output block (f32)


def _pick_tiles(n, d, w_itemsize, budget_bytes):
    """Pick (tj, ti).

    ti: reduction chunk — largest multiple of 8 dividing n, capped at 32, so the
        unrolled VPU loop stays short while cutting per-step pipeline overhead.
    tj: output tile — prefer >= 2 (ideally 8) tiles on the "parallel" j axis
        (megacore / v7x 2nd TC), then the largest tj that fits the VMEM budget
        (largest per-step W slab -> best HBM stream efficiency).
    """
    assert n % 8 == 0
    ti = max(t for t in (8, 16, 24, 32) if n % t == 0)

    cands = [t for t in range(8, n + 1, 8) if n % t == 0]
    fits = [t for t in cands if _tile_vmem_bytes(t, ti, d, w_itemsize) <= budget_bytes]
    if not fits:
        fits = [min(cands)]

    def key(t):
        n_tiles = n // t
        return (n_tiles >= 2, min(n_tiles, 8), t)

    tj = max(fits, key=key)
    return tj, ti


# --------------------------------------------------------------------------- #
# Parameter prep (run once per parameter update, reused across forward calls)
# --------------------------------------------------------------------------- #
def precompute_g2_params(w, r, param_dtype=None):
    """Prep W and R for the kernel.

    * r_sum = sum_i R[j,i,:], reduced in f32 (kept f32: it is tiny and folded
      into the f32 'base' operand in the wrapper).
    * W transposed once to (i, j, D) so the kernel slices its leading axis.
    * Optionally store W in bf16 (param_dtype) — the kernel upcasts to f32.
    """
    r_sum = r.astype(jnp.float32).sum(axis=1)
    w_t = jnp.swapaxes(w, 0, 1)  # (i, j, D)
    if param_dtype is not None:
        w_t = w_t.astype(param_dtype)
    return w_t, r_sum


# --------------------------------------------------------------------------- #
# Forward wrapper
# --------------------------------------------------------------------------- #
def g2_update(all_node_embedding, w_t, r_sum, number_node_g2, tj=None, ti=None):
    """Pallas implementation of G2_update.forward.

    all_node_embedding: (total, D) f32 table
    w_t:                (N_G2, N_G2, D) pre-transposed weights (f32 or bf16)
    r_sum:              (N_G2, D) f32, from precompute_g2_params
    Returns the full table with rows [0, N_G2) replaced.
    """
    n = number_node_g2
    total, d = all_node_embedding.shape
    assert w_t.shape == (n, n, d)
    assert r_sum.shape == (n, d)
    assert all_node_embedding.dtype == jnp.float32
    # Output blocks of (tj, d) on the (total, d) table need tj % 8 == 0.
    # TODO(synk): pad N_G2 up to a multiple of 8 to support arbitrary graph sizes.
    assert n % 8 == 0, "N_G2 must be a multiple of 8"

    w_itemsize = jnp.dtype(w_t.dtype).itemsize
    budget = _vmem_budget_bytes()
    tj_auto, ti_auto = _pick_tiles(n, d, w_itemsize, budget)
    if tj is None:
        tj = tj_auto
    if ti is None:
        ti = ti_auto
    assert n % tj == 0 and n % ti == 0 and tj % 8 == 0 and ti <= 32

    est = _tile_vmem_bytes(tj, ti, d, w_itemsize)
    # Raise the scoped VMEM limit (defaults: 16 MiB v5e / 32 MiB v6e+) while
    # staying inside the per-generation budget.
    vmem_limit = int(max(32 << 20, min(est + (8 << 20), budget + (16 << 20))))

    # Glue reads from a buffer distinct from the aliased table operand:
    # emb_g2 (a proper slice) and base (an add output) are separate buffers,
    # so reading E while rows [0, N) are overwritten in place is safe.
    emb_g2 = all_node_embedding[:n]
    base = emb_g2 + r_sum                    # collapses e_j residual + r_sum streams

    flops = 2 * n * n * d
    bytes_accessed = int(n * n * d * w_itemsize          # W stream (dominant)
                         + (n // tj) * n * d * 4          # E chunks, re-read per j tile
                         + 3 * n * d * 4)                 # base in + out write (+slack)

    alias = {3: 0} if n < total else {}      # n == total: every block written anyway

    out = pl.pallas_call(
        g2_update_kernel,
        out_shape=jax.ShapeDtypeStruct((total, d), all_node_embedding.dtype),
        grid_spec=pltpu.PrefetchScalarGridSpec(
            num_scalar_prefetch=0,
            grid=(n // tj, n // ti),                           # (j tiles, i chunks)
            in_specs=[
                pl.BlockSpec((ti, d), lambda j, i: (i, 0)),         # E chunk (reduction)
                pl.BlockSpec((tj, d), lambda j, i: (j, 0)),         # base = E[j] + r_sum
                pl.BlockSpec((ti, tj, d), lambda j, i: (i, j, 0)),  # W^T slab
                pl.BlockSpec(memory_space=pl.ANY),                  # full table (alias)
            ],
            out_specs=pl.BlockSpec((tj, d), lambda j, i: (j, 0)),
        ),
        compiler_params=pltpu.CompilerParams(
            dimension_semantics=("parallel", "arbitrary"),
            vmem_limit_bytes=vmem_limit,
        ),
        cost_estimate=pl.CostEstimate(flops=flops, transcendentals=0,
                                      bytes_accessed=bytes_accessed),
        input_output_aliases=alias,
    )(emb_g2, base, w_t, all_node_embedding)
    return out


# --------------------------------------------------------------------------- #
# Reference + self-test
# --------------------------------------------------------------------------- #
def _reference(all_node_embedding, w, r, n):
    e = all_node_embedding[:n]                              # (N, D)
    three_dim_node = jnp.broadcast_to(e[None, :, :], w.shape)
    new = (three_dim_node * w + r).sum(axis=1) + e
    return all_node_embedding.at[:n].set(new)


if __name__ == "__main__":
    # Small, lane-friendly shapes consistent with the module.
    number_node_g2 = 16
    embedding_dim = 128
    num_nodes_total = 24

    key = jax.random.PRNGKey(0)
    k_emb, k_w, k_r = jax.random.split(key, 3)

    all_node_embedding = jax.random.normal(
        k_emb, (num_nodes_total, embedding_dim), dtype=jnp.float32)
    g2_three_dim_node_weights = jax.random.normal(
        k_w, (number_node_g2, number_node_g2, embedding_dim), dtype=jnp.float32)
    g2_three_dim_relation = jax.random.normal(
        k_r, (number_node_g2, number_node_g2, embedding_dim), dtype=jnp.float32)

    # Reference first (the kernel aliases / may consume the table buffer).
    ref = jax.block_until_ready(_reference(
        all_node_embedding, g2_three_dim_node_weights,
        g2_three_dim_relation, number_node_g2))

    # jit with the table donated so input_output_aliases is a true in-place update.
    g2_fn = jax.jit(
        lambda emb, w_t, r_sum: g2_update(emb, w_t, r_sum, number_node_g2),
        donate_argnums=(0,))

    # --- f32 W path (exactness check) -------------------------------------- #
    w_t_f32, r_sum = precompute_g2_params(
        g2_three_dim_node_weights, g2_three_dim_relation)
    out = g2_fn(jnp.array(all_node_embedding), w_t_f32, r_sum)
    out = jax.block_until_ready(out)
    np.testing.assert_allclose(np.asarray(out), np.asarray(ref),
                               rtol=1e-4, atol=1e-4)

    # --- bf16 W path (halves the dominant HBM stream; kernel upcasts) ------ #
    w_t_bf16, r_sum_b = precompute_g2_params(
        g2_three_dim_node_weights, g2_three_dim_relation,
        param_dtype=jnp.bfloat16)
    out_bf16 = g2_fn(jnp.array(all_node_embedding), w_t_bf16, r_sum_b)
    out_bf16 = jax.block_until_ready(out_bf16)
    np.testing.assert_allclose(np.asarray(out_bf16), np.asarray(ref),
                               rtol=2e-2, atol=5e-2)

    print("KERNEL_OK")
</pallas_src>

<mosaic_0001>
module attributes {stable_mosaic.version = 11 : i64} {
  func.func @g2_update_kernel(%arg0: i32, %arg1: i32, %arg2: memref<16x128xf32, #tpu.memory_space<vmem>>, %arg3: memref<8x128xf32, #tpu.memory_space<vmem>>, %arg4: memref<16x8x128xf32, #tpu.memory_space<vmem>>, %arg5: memref<24x128xf32, #tpu.memory_space<any>>, %arg6: memref<8x128xf32, #tpu.memory_space<vmem>>) attributes {dimension_semantics = [#tpu.dimension_semantics<parallel>, #tpu.dimension_semantics<arbitrary>], iteration_bounds = array<i64: 2, 1>, scalar_prefetch = 0 : i64, scratch_operands = 0 : i64, tpu.core_type = #tpu.core_type<tc>, window_params = [{transform_indices = @transform_0, window_bounds = array<i64: 16, 128>}, {transform_indices = @transform_1, window_bounds = array<i64: 8, 128>}, {transform_indices = @transform_2, window_bounds = array<i64: 16, 8, 128>}, {}, {transform_indices = @transform_4, window_bounds = array<i64: 8, 128>}]} {
    %c0_i32 = arith.constant 0 : i32
    %0 = arith.cmpi eq, %arg1, %c0_i32 : i32
    %1 = arith.extui %0 : i1 to i32
    %c0_i32_0 = arith.constant 0 : i32
    %2 = arith.cmpi ne, %1, %c0_i32_0 : i32
    scf.if %2 {
      %c0_39 = arith.constant 0 : index
      %c0_40 = arith.constant 0 : index
      %102 = vector.load %arg3[%c0_39, %c0_40] : memref<8x128xf32, #tpu.memory_space<vmem>>, vector<8x128xf32>
      %c0_41 = arith.constant 0 : index
      %c0_42 = arith.constant 0 : index
      %103 = vector.load %arg6[%c0_41, %c0_42] : memref<8x128xf32, #tpu.memory_space<vmem>>, vector<8x128xf32>
      tpu.vector_store %arg6[%c0_41, %c0_42], %102 {strides = array<i32>} : memref<8x128xf32, #tpu.memory_space<vmem>>, vector<8x128xf32>,
    } else {
    }
    %c0 = arith.constant 0 : index
    %c0_1 = arith.constant 0 : index
    %3 = vector.load %arg2[%c0, %c0_1] : memref<16x128xf32, #tpu.memory_space<vmem>>, vector<16x128xf32>
    %c0_2 = arith.constant 0 : index
    %c0_3 = arith.constant 0 : index
    %4 = vector.load %arg6[%c0_2, %c0_3] : memref<8x128xf32, #tpu.memory_space<vmem>>, vector<8x128xf32>
    %c0_4 = arith.constant 0 : index
    %c0_5 = arith.constant 0 : index
    %c0_6 = arith.constant 0 : index
    %5 = vector.load %arg4[%c0_4, %c0_5, %c0_6] : memref<16x8x128xf32, #tpu.memory_space<vmem>>, vector<1x8x128xf32>
    %6 = vector.shape_cast %5 : vector<1x8x128xf32> to vector<8x128xf32>
    %7 = vector.extract_strided_slice %3 {offsets = [0, 0], sizes = [1, 128], strides = [1, 1]} : vector<16x128xf32> to vector<1x128xf32>
    %8 = vector.broadcast %7 : vector<1x128xf32> to vector<8x128xf32>
    %9 = arith.mulf %6, %8 : vector<8x128xf32>
    %10 = arith.addf %4, %9 : vector<8x128xf32>
    %c1 = arith.constant 1 : index
    %c0_7 = arith.constant 0 : index
    %c0_8 = arith.constant 0 : index
    %11 = vector.load %arg4[%c1, %c0_7, %c0_8] : memref<16x8x128xf32, #tpu.memory_space<vmem>>, vector<1x8x128xf32>
    %12 = vector.shape_cast %11 : vector<1x8x128xf32> to vector<8x128xf32>
    %13 = vector.extract_strided_slice %3 {offsets = [1, 0], sizes = [1, 128], strides = [1, 1]} : vector<16x128xf32> to vector<1x128xf32>
    %14 = vector.broadcast %13 : vector<1x128xf32> to vector<8x128xf32>
    %15 = arith.mulf %12, %14 : vector<8x128xf32>
    %16 = arith.addf %10, %15 : vector<8x128xf32>
    %c2 = arith.constant 2 : index
    %c0_9 = arith.constant 0 : index
    %c0_10 = arith.constant 0 : index
    %17 = vector.load %arg4[%c2, %c0_9, %c0_10] : memref<16x8x128xf32, #tpu.memory_space<vmem>>, vector<1x8x128xf32>
    %18 = vector.shape_cast %17 : vector<1x8x128xf32> to vector<8x128xf32>
    %19 = vector.extract_strided_slice %3 {offsets = [2, 0], sizes = [1, 128], strides = [1, 1]} : vector<16x128xf32> to vector<1x128xf32>
    %20 = vector.broadcast %19 : vector<1x128xf32> to vector<8x128xf32>
    %21 = arith.mulf %18, %20 : vector<8x128xf32>
    %22 = arith.addf %16, %21 : vector<8x128xf32>
    %c3 = arith.constant 3 : index
    %c0_11 = arith.constant 0 : index
    %c0_12 = arith.constant 0 : index
    %23 = vector.load %arg4[%c3, %c0_11, %c0_12] : memref<16x8x128xf32, #tpu.memory_space<vmem>>, vector<1x8x128xf32>
    %24 = vector.shape_cast %23 : vector<1x8x128xf32> to vector<8x128xf32>
    %25 = vector.extract_strided_slice %3 {offsets = [3, 0], sizes = [1, 128], strides = [1, 1]} : vector<16x128xf32> to vector<1x128xf32>
    %26 = vector.broadcast %25 : vector<1x128xf32> to vector<8x128xf32>
    %27 = arith.mulf %24, %26 : vector<8x128xf32>
    %28 = arith.addf %22, %27 : vector<8x128xf32>
    %c4 = arith.constant 4 : index
    %c0_13 = arith.constant 0 : index
    %c0_14 = arith.constant 0 : index
    %29 = vector.load %arg4[%c4, %c0_13, %c0_14] : memref<16x8x128xf32, #tpu.memory_space<vmem>>, vector<1x8x128xf32>
    %30 = vector.shape_cast %29 : vector<1x8x128xf32> to vector<8x128xf32>
    %31 = vector.extract_strided_slice %3 {offsets = [4, 0], sizes = [1, 128], strides = [1, 1]} : vector<16x128xf32> to vector<1x128xf32>
    %32 = vector.broadcast %31 : vector<1x128xf32> to vector<8x128xf32>
    %33 = arith.mulf %30, %32 : vector<8x128xf32>
    %34 = arith.addf %28, %33 : vector<8x128xf32>
    %c5 = arith.constant 5 : index
    %c0_15 = arith.constant 0 : index
    %c0_16 = arith.constant 0 : index
    %35 = vector.load %arg4[%c5, %c0_15, %c0_16] : memref<16x8x128xf32, #tpu.memory_space<vmem>>, vector<1x8x128xf32>
    %36 = vector.shape_cast %35 : vector<1x8x128xf32> to vector<8x128xf32>
    %37 = vector.extract_strided_slice %3 {offsets = [5, 0], sizes = [1, 128], strides = [1, 1]} : vector<16x128xf32> to vector<1x128xf32>
    %38 = vector.broadcast %37 : vector<1x128xf32> to vector<8x128xf32>
    %39 = arith.mulf %36, %38 : vector<8x128xf32>
    %40 = arith.addf %34, %39 : vector<8x128xf32>
    %c6 = arith.constant 6 : index
    %c0_17 = arith.constant 0 : index
    %c0_18 = arith.constant 0 : index
    %41 = vector.load %arg4[%c6, %c0_17, %c0_18] : memref<16x8x128xf32, #tpu.memory_space<vmem>>, vector<1x8x128xf32>
    %42 = vector.shape_cast %41 : vector<1x8x128xf32> to vector<8x128xf32>
    %43 = vector.extract_strided_slice %3 {offsets = [6, 0], sizes = [1, 128], strides = [1, 1]} : vector<16x128xf32> to vector<1x128xf32>
    %44 = vector.broadcast %43 : vector<1x128xf32> to vector<8x128xf32>
    %45 = arith.mulf %42, %44 : vector<8x128xf32>
    %46 = arith.addf %40, %45 : vector<8x128xf32>
    %c7 = arith.constant 7 : index
    %c0_19 = arith.constant 0 : index
    %c0_20 = arith.constant 0 : index
    %47 = vector.load %arg4[%c7, %c0_19, %c0_20] : memref<16x8x128xf32, #tpu.memory_space<vmem>>, vector<1x8x128xf32>
    %48 = vector.shape_cast %47 : vector<1x8x128xf32> to vector<8x128xf32>
    %49 = vector.extract_strided_slice %3 {offsets = [7, 0], sizes = [1, 128], strides = [1, 1]} : vector<16x128xf32> to vector<1x128xf32>
    %50 = vector.broadcast %49 : vector<1x128xf32> to vector<8x128xf32>
    %51 = arith.mulf %48, %50 : vector<8x128xf32>
    %52 = arith.addf %46, %51 : vector<8x128xf32>
    %c8 = arith.constant 8 : index
    %c0_21 = arith.constant 0 : index
    %c0_22 = arith.constant 0 : index
    %53 = vector.load %arg4[%c8, %c0_21, %c0_22] : memref<16x8x128xf32, #tpu.memory_space<vmem>>, vector<1x8x128xf32>
    %54 = vector.shape_cast %53 : vector<1x8x128xf32> to vector<8x128xf32>
    %55 = vector.extract_strided_slice %3 {offsets = [8, 0], sizes = [1, 128], strides = [1, 1]} : vector<16x128xf32> to vector<1x128xf32>
    %56 = vector.broadcast %55 : vector<1x128xf32> to vector<8x128xf32>
    %57 = arith.mulf %54, %56 : vector<8x128xf32>
    %58 = arith.addf %52, %57 : vector<8x128xf32>
    %c9 = arith.constant 9 : index
    %c0_23 = arith.constant 0 : index
    %c0_24 = arith.constant 0 : index
    %59 = vector.load %arg4[%c9, %c0_23, %c0_24] : memref<16x8x128xf32, #tpu.memory_space<vmem>>, vector<1x8x128xf32>
    %60 = vector.shape_cast %59 : vector<1x8x128xf32> to vector<8x128xf32>
    %61 = vector.extract_strided_slice %3 {offsets = [9, 0], sizes = [1, 128], strides = [1, 1]} : vector<16x128xf32> to vector<1x128xf32>
    %62 = vector.broadcast %61 : vector<1x128xf32> to vector<8x128xf32>
    %63 = arith.mulf %60, %62 : vector<8x128xf32>
    %64 = arith.addf %58, %63 : vector<8x128xf32>
    %c10 = arith.constant 10 : index
    %c0_25 = arith.constant 0 : index
    %c0_26 = arith.constant 0 : index
    %65 = vector.load %arg4[%c10, %c0_25, %c0_26] : memref<16x8x128xf32, #tpu.memory_space<vmem>>, vector<1x8x128xf32>
    %66 = vector.shape_cast %65 : vector<1x8x128xf32> to vector<8x128xf32>
    %67 = vector.extract_strided_slice %3 {offsets = [10, 0], sizes = [1, 128], strides = [1, 1]} : vector<16x128xf32> to vector<1x128xf32>
    %68 = vector.broadcast %67 : vector<1x128xf32> to vector<8x128xf32>
    %69 = arith.mulf %66, %68 : vector<8x128xf32>
    %70 = arith.addf %64, %69 : vector<8x128xf32>
    %c11 = arith.constant 11 : index
    %c0_27 = arith.constant 0 : index
    %c0_28 = arith.constant 0 : index
    %71 = vector.load %arg4[%c11, %c0_27, %c0_28] : memref<16x8x128xf32, #tpu.memory_space<vmem>>, vector<1x8x128xf32>
    %72 = vector.shape_cast %71 : vector<1x8x128xf32> to vector<8x128xf32>
    %73 = vector.extract_strided_slice %3 {offsets = [11, 0], sizes = [1, 128], strides = [1, 1]} : vector<16x128xf32> to vector<1x128xf32>
    %74 = vector.broadcast %73 : vector<1x128xf32> to vector<8x128xf32>
    %75 = arith.mulf %72, %74 : vector<8x128xf32>
    %76 = arith.addf %70, %75 : vector<8x128xf32>
    %c12 = arith.constant 12 : index
    %c0_29 = arith.constant 0 : index
    %c0_30 = arith.constant 0 : index
    %77 = vector.load %arg4[%c12, %c0_29, %c0_30] : memref<16x8x128xf32, #tpu.memory_space<vmem>>, vector<1x8x128xf32>
    %78 = vector.shape_cast %77 : vector<1x8x128xf32> to vector<8x128xf32>
    %79 = vector.extract_strided_slice %3 {offsets = [12, 0], sizes = [1, 128], strides = [1, 1]} : vector<16x128xf32> to vector<1x128xf32>
    %80 = vector.broadcast %79 : vector<1x128xf32> to vector<8x128xf32>
    %81 = arith.mulf %78, %80 : vector<8x128xf32>
    %82 = arith.addf %76, %81 : vector<8x128xf32>
    %c13 = arith.constant 13 : index
    %c0_31 = arith.constant 0 : index
    %c0_32 = arith.constant 0 : index
    %83 = vector.load %arg4[%c13, %c0_31, %c0_32] : memref<16x8x128xf32, #tpu.memory_space<vmem>>, vector<1x8x128xf32>
    %84 = vector.shape_cast %83 : vector<1x8x128xf32> to vector<8x128xf32>
    %85 = vector.extract_strided_slice %3 {offsets = [13, 0], sizes = [1, 128], strides = [1, 1]} : vector<16x128xf32> to vector<1x128xf32>
    %86 = vector.broadcast %85 : vector<1x128xf32> to vector<8x128xf32>
    %87 = arith.mulf %84, %86 : vector<8x128xf32>
    %88 = arith.addf %82, %87 : vector<8x128xf32>
    %c14 = arith.constant 14 : index
    %c0_33 = arith.constant 0 : index
    %c0_34 = arith.constant 0 : index
    %89 = vector.load %arg4[%c14, %c0_33, %c0_34] : memref<16x8x128xf32, #tpu.memory_space<vmem>>, vector<1x8x128xf32>
    %90 = vector.shape_cast %89 : vector<1x8x128xf32> to vector<8x128xf32>
    %91 = vector.extract_strided_slice %3 {offsets = [14, 0], sizes = [1, 128], strides = [1, 1]} : vector<16x128xf32> to vector<1x128xf32>
    %92 = vector.broadcast %91 : vector<1x128xf32> to vector<8x128xf32>
    %93 = arith.mulf %90, %92 : vector<8x128xf32>
    %94 = arith.addf %88, %93 : vector<8x128xf32>
    %c15 = arith.constant 15 : index
    %c0_35 = arith.constant 0 : index
    %c0_36 = arith.constant 0 : index
    %95 = vector.load %arg4[%c15, %c0_35, %c0_36] : memref<16x8x128xf32, #tpu.memory_space<vmem>>, vector<1x8x128xf32>
    %96 = vector.shape_cast %95 : vector<1x8x128xf32> to vector<8x128xf32>
    %97 = vector.extract_strided_slice %3 {offsets = [15, 0], sizes = [1, 128], strides = [1, 1]} : vector<16x128xf32> to vector<1x128xf32>
    %98 = vector.broadcast %97 : vector<1x128xf32> to vector<8x128xf32>
    %99 = arith.mulf %96, %98 : vector<8x128xf32>
    %100 = arith.addf %94, %99 : vector<8x128xf32>
    %c0_37 = arith.constant 0 : index
    %c0_38 = arith.constant 0 : index
    %101 = vector.load %arg6[%c0_37, %c0_38] : memref<8x128xf32, #tpu.memory_space<vmem>>, vector<8x128xf32>
    tpu.vector_store %arg6[%c0_37, %c0_38], %100 {strides = array<i32>} : memref<8x128xf32, #tpu.memory_space<vmem>>, vector<8x128xf32>,
    return
  }
  func.func @transform_0(%arg0: i32, %arg1: i32) -> (i32, i32) {
    %c0_i32 = arith.constant 0 : i32
    %c0_i32_0 = arith.constant 0 : i32
    return %arg1, %c0_i32 : i32, i32
  }
  func.func @transform_1(%arg0: i32, %arg1: i32) -> (i32, i32) {
    %c0_i32 = arith.constant 0 : i32
    %c0_i32_0 = arith.constant 0 : i32
    return %arg0, %c0_i32 : i32, i32
  }
  func.func @transform_2(%arg0: i32, %arg1: i32) -> (i32, i32, i32) {
    %c0_i32 = arith.constant 0 : i32
    %c0_i32_0 = arith.constant 0 : i32
    return %arg1, %arg0, %c0_i32 : i32, i32, i32
  }
  func.func @transform_4(%arg0: i32, %arg1: i32) -> (i32, i32) {
    %c0_i32 = arith.constant 0 : i32
    %c0_i32_0 = arith.constant 0 : i32
    return %arg0, %c0_i32 : i32, i32
  }
}

</mosaic_0001>

<llo_original>
// kernel: _lambda_.1
$region0: #{_lambda_.1}
  #allocation0 [shape = 'u32[]', space=smem, size = 0x4, offset = 0x4, fixed_abs, tag = 'smem constant byte address 0x4 - core index']
  #allocation1 [shape = 'u32[144,128]{1,0:T(1,128)}', space=vmem, size = 0x12000, scoped, tag = 'internal scratch']
  %s0 = inlined_call_operand.vmem [shape: f32[16,128], index: 0, kind: input, shape index: {}]
  %s1 = inlined_call_operand.vmem [shape: f32[16,128], index: 1, kind: input, shape index: {}]
  %s2 = inlined_call_operand.hbm [shape: f32[16,16,128], index: 2, kind: input, shape index: {}]
  %s3 = inlined_call_operand.hbm [shape: f32[24,128], index: 3, kind: input, shape index: {}, may-alias: {3,4}]
  %s4 = inlined_call_operand.hbm [shape: f32[24,128], index: 4, kind: output, shape index: {}, may-alias: {3,4}]
  %s5 = sld [smem:[#allocation0]]
  $region53: #{_lambda_.1} parent=0
    _
  %s7 = ssub.s32 1, %s5
  %s8 = scalar_select 0, %s7, %s5
  $region1: #{_lambda_.1} parent=0
    #allocation2 [shape = 'u8[131072]{0}', space=vmem, size = 0x20000, scoped, tag = 'input window, operand 2']
    #allocation3 [shape = 's32[2]{0}', space=sflag, size = 0x8, scoped, tag = 'scoped memory for _lambda_.1']
    #allocation4 [shape = 's32[2]{0}', space=sflag, size = 0x8, scoped, tag = 'scoped memory for _lambda_.1']
    #allocation5 [shape = 'u8[8192]{0}', space=vmem, size = 0x2000, scoped, tag = 'output window, operand 0']
    %9 = vsyncpa [#allocation3], 0
    %s10 = scalar_lea.sflag [#allocation3], 1
    %11 = vsyncpa %s10, 0
    %12 = vsyncpa [#allocation4], 0
    %s13 = scalar_lea.sflag [#allocation4], 1
    %14 = vsyncpa %s13, 0
    loop: start=0, step=1, limit=4
    $region2: #{_lambda_.1} parent=1 // loop_pre_header
      _
    $region3: #{_lambda_.1} parent=1 // loop_header
      %s16 = sphi 0, %s20
      %p17 = scmp.ge.s32.totalorder %s16, 4
      %s23 = sphi 0, %s35
      %s24 = sphi 0, %s31
      %s25 = sphi 0, %s23
      %s26 = sphi 0, %s24
      %s27 = sphi 0, %s25
      %s28 = sphi 0, %s26
      %s38 = sphi 0, %s40
      %s41 = sphi 0, %s38
      %s42 = sphi 0, %s41
      %s58 = sphi 0, %s42
      %s64 = sphi 0, %s66
      %s67 = sphi 0, %s64
      %s68 = sphi 0, %s67
      %s84 = sphi 0, %s68
      %s92 = sphi 0, %s94
      %s95 = sphi 0, %s92
      %s96 = sphi 0, %s95
      %s112 = sphi 0, %s96
      %s118 = sphi 0, %s120
      %s121 = sphi 0, %s118
      %s122 = sphi 0, %s121
      %s138 = sphi 0, %s122
    $region4: #{_lambda_.1} parent=1 // loop_header_branch
      %19 = sbr.rel (%p17) target = $region8
    $region5: #{_lambda_.1} parent=1 // loop_body
      %s21 = ssub.s32 %s16, 1
      %s22 = ssub.s32 %s16, 2
      %s29 = sadd.s32 1, %s24
      %p30 = scmp.ge.s32.totalorder %s29, 1
      %s31 = scalar_select %p30, 0, %s29
      %s32 = sadd.s32 1, %s23
      %s33 = scalar_select %p30, %s32, %s23
      %p34 = scmp.ge.s32.totalorder %s33, 2
      %s35 = scalar_select %p34, 0, %s33
      %s36 = ssub.s32 %s24, %s31
      %p37 = scmp.eq.s32.totalorder %s36, 0
      %s39 = sadd.s32 %s38, 1
      %s40 = scalar_select %p37, %s38, %s39
      %p43 = pneg %p37
      %p44 = scmp.eq.s32.totalorder %s16, 1
      %p45 = por %p43, %p44
      %p46 = scmp.ne.s32.totalorder %s38, %s41
      %p47 = scmp.eq.s32.totalorder %s16, 0
      %p48 = por %p46, %p47
      %p49 = scmp.ne.s32.totalorder %s38, %s41
      %p50 = scmp.eq.s32.totalorder %s21, 1
      %p51 = por %p49, %p50
      %p52 = scmp.ne.s32.totalorder %s41, %s42
      %p53 = scmp.eq.s32.totalorder %s21, 0
      %p54 = por %p52, %p53
      %p55 = scmp.ne.s32.totalorder %s41, %s42
      %p56 = scmp.eq.s32.totalorder %s22, 1
      %p57 = por %p55, %p56
      %p59 = scmp.ne.s32.totalorder %s42, %s58
      %p60 = scmp.eq.s32.totalorder %s22, 0
      %p61 = por %p59, %p60
      %s62 = ssub.s32 %s23, %s35
      %p63 = scmp.eq.s32.totalorder %s62, 0
      %s65 = sadd.s32 %s64, 1
      %s66 = scalar_select %p63, %s64, %s65
      %p69 = pneg %p63
      %p70 = scmp.eq.s32.totalorder %s16, 1
      %p71 = por %p69, %p70
      %p72 = scmp.ne.s32.totalorder %s64, %s67
      %p73 = scmp.eq.s32.totalorder %s16, 0
      %p74 = por %p72, %p73
      %p75 = scmp.ne.s32.totalorder %s64, %s67
      %p76 = scmp.eq.s32.totalorder %s21, 1
      %p77 = por %p75, %p76
      %p78 = scmp.ne.s32.totalorder %s67, %s68
      %p79 = scmp.eq.s32.totalorder %s21, 0
      %p80 = por %p78, %p79
      %p81 = scmp.ne.s32.totalorder %s67, %s68
      %p82 = scmp.eq.s32.totalorder %s22, 1
      %p83 = por %p81, %p82
      %p85 = scmp.ne.s32.totalorder %s68, %s84
      %p86 = scmp.eq.s32.totalorder %s22, 0
      %p87 = por %p85, %p86
      %s88 = ssub.s32 %s24, %s31
      %s89 = ssub.s32 %s23, %s35
      %s90 = sor.u32 %s88, %s89
      %p91 = scmp.eq.s32.totalorder %s90, 0
      %s93 = sadd.s32 %s92, 1
      %s94 = scalar_select %p91, %s92, %s93
      %p97 = pneg %p91
      %p98 = scmp.eq.s32.totalorder %s16, 1
      %p99 = por %p97, %p98
      %p100 = scmp.ne.s32.totalorder %s92, %s95
      %p101 = scmp.eq.s32.totalorder %s16, 0
      %p102 = por %p100, %p101
      %p103 = scmp.ne.s32.totalorder %s92, %s95
      %p104 = scmp.eq.s32.totalorder %s21, 1
      %p105 = por %p103, %p104
      %p106 = scmp.ne.s32.totalorder %s95, %s96
      %p107 = scmp.eq.s32.totalorder %s21, 0
      %p108 = por %p106, %p107
      %p109 = scmp.ne.s32.totalorder %s95, %s96
      %p110 = scmp.eq.s32.totalorder %s22, 1
      %p111 = por %p109, %p110
      %p113 = scmp.ne.s32.totalorder %s96, %s112
      %p114 = scmp.eq.s32.totalorder %s22, 0
      %p115 = por %p113, %p114
      %s116 = ssub.s32 %s23, %s35
      %p117 = scmp.eq.s32.totalorder %s116, 0
      %s119 = sadd.s32 %s118, 1
      %s120 = scalar_select %p117, %s118, %s119
      %p123 = pneg %p117
      %p124 = scmp.eq.s32.totalorder %s16, 1
      %p125 = por %p123, %p124
      %p126 = scmp.ne.s32.totalorder %s118, %s121
      %p127 = scmp.eq.s32.totalorder %s16, 0
      %p128 = por %p126, %p127
      %p129 = scmp.ne.s32.totalorder %s118, %s121
      %p130 = scmp.eq.s32.totalorder %s21, 1
      %p131 = por %p129, %p130
      %p132 = scmp.ne.s32.totalorder %s121, %s122
      %p133 = scmp.eq.s32.totalorder %s21, 0
      %p134 = por %p132, %p133
      %p135 = scmp.ne.s32.totalorder %s121, %s122
      %p136 = scmp.eq.s32.totalorder %s22, 1
      %p137 = por %p135, %p136
      %p139 = scmp.ne.s32.totalorder %s122, %s138
      %p140 = scmp.eq.s32.totalorder %s22, 0
      %p141 = por %p139, %p140
      %p142 = scmp.le.s32.totalorder 1, %s16
      %p143 = scmp.lt.s32.totalorder %s16, 3
      %p144 = pnand %p142, %p143
      %p145 = pneg %p144
      // Predicated region
      $region9: #{_lambda_.1} parent=5 // pred_check
        _
      $region10: #{_lambda_.1} parent=5 // pred_check_branch
        %147 = sbr.rel (%p144) target = $region12
      $region11: #{_lambda_.1} parent=5 // pred_region
        %s148 = ssub.s32 %s16, 1
        // Predicated region
        $region13: #{_lambda_.1} parent=11 // pred_check
          %p149 = pneg %p54
        $region14: #{_lambda_.1} parent=11 // pred_check_branch
          %151 = sbr.rel (%p149) target = $region16
        $region15: #{_lambda_.1} parent=11 // pred_region
          %s152 = smul.u32 2, %s26
          %p153 = scmp.lt.s32.totalorder %s152, 1
          %s154 = scalar_select %p153, %s152, 1
          %s155 = smul.addr %s154, 8
          %s156 = scalar_lea.vmem %s0, %s155
          %s157 = smul.u32 2, %s26
        $region16: #{_lambda_.1} parent=11 // pred_fallthru
          _
      $region12: #{_lambda_.1} parent=5 // pred_fallthru
        _
      %p158 = scmp.lt.s32.totalorder %s16, 2
      // Predicated region
      $region17: #{_lambda_.1} parent=5 // pred_check
        %p159 = pneg %p158
      $region18: #{_lambda_.1} parent=5 // pred_check_branch
        %161 = sbr.rel (%p159) target = $region20
      $region19: #{_lambda_.1} parent=5 // pred_region
        // Predicated region
        $region21: #{_lambda_.1} parent=19 // pred_check
          %p162 = pneg %p74
        $region22: #{_lambda_.1} parent=19 // pred_check_branch
          %164 = sbr.rel (%p162) target = $region24
        $region23: #{_lambda_.1} parent=19 // pred_region
          %p165 = scmp.lt.s32.totalorder %s23, 1
          %s166 = scalar_select %p165, %s23, 1
          %s167 = smul.addr %s166, 8
          %s168 = scalar_lea.vmem %s1, %s167
        $region24: #{_lambda_.1} parent=19 // pred_fallthru
          _
        // Predicated region
        $region25: #{_lambda_.1} parent=19 // pred_check
          %p169 = pneg %p102
        $region26: #{_lambda_.1} parent=19 // pred_check_branch
          %171 = sbr.rel (%p169) target = $region28
        $region27: #{_lambda_.1} parent=19 // pred_region
          %s172 = sand.u32 %s92, 1
          %s173 = scalar_lea.sflag [#allocation3], %s172
          %s174 = sand.u32 %s92, 1
          %s175 = smul.addr %s174, 128
          %s176 = scalar_lea.vmem [#allocation2], %s175
          %s177 = smul.u32 16, %s24
          %s179 = ssub.s32 2048, 2048
          %180 = vsyncadd %s173, %s179
          %s181 = smul.addr %s177, 2
          %s182 = sadd.s32 %s23, %s181
          %s183 = smul.addr %s182, 128
          %s184 = scalar_lea.hbm %s2, %s183
          %s185 = sshll.u32 %s176, 4
          %s186 = int_to_ptr.vmem [resolvable:$true] %s185
          %191 = dma.hbm_to_vmem [thread:$0]  %s184, 2048, %s186, %s173, 256, 128, 8
        $region28: #{_lambda_.1} parent=19 // pred_fallthru
          _
      $region20: #{_lambda_.1} parent=5 // pred_fallthru
        _
      %p192 = scmp.le.s32.totalorder 1, %s16
      %p193 = scmp.lt.s32.totalorder %s16, 3
      %p194 = pnand %p192, %p193
      %p195 = pneg %p194
      // Predicated region
      $region29: #{_lambda_.1} parent=5 // pred_check
        _
      $region30: #{_lambda_.1} parent=5 // pred_check_branch
        %197 = sbr.rel (%p194) target = $region32
      $region31: #{_lambda_.1} parent=5 // pred_region
        %s198 = ssub.s32 %s16, 1
        %s199 = sand.u32 %s95, 1
        %s200 = scalar_lea.sflag [#allocation3], %s199
        %s201 = sand.u32 %s95, 1
        %s202 = smul.addr %s201, 128
        %s203 = scalar_lea.vmem [#allocation2], %s202
        // Predicated region
        $region33: #{_lambda_.1} parent=31 // pred_check
          %p204 = pneg %p108
        $region34: #{_lambda_.1} parent=31 // pred_check_branch
          %206 = sbr.rel (%p204) target = $region36
        $region35: #{_lambda_.1} parent=31 // pred_region
          %207 = dma.done %s200, 2048
        $region36: #{_lambda_.1} parent=31 // pred_fallthru
          _
        %s208 = smul.u32 2, %s26
        %p209 = scmp.lt.s32.totalorder %s208, 1
        %s210 = scalar_select %p209, %s208, 1
        %s211 = smul.addr %s210, 8
        %s212 = scalar_lea.vmem %s0, %s211
        %p213 = pneg %p54
        %p214 = pneg %p51
        %p215 = scmp.lt.s32.totalorder %s25, 1
        %s216 = scalar_select %p215, %s25, 1
        %s217 = smul.addr %s216, 8
        %s218 = scalar_lea.vmem %s1, %s217
        %p219 = pneg %p80
        %p220 = pneg %p77
        %s221 = sand.u32 %s95, 1
        %s222 = scalar_lea.sflag [#allocation3], %s221
        %s223 = sand.u32 %s95, 1
        %s224 = smul.addr %s223, 128
        %s225 = scalar_lea.vmem [#allocation2], %s224
        %p226 = pneg %p108
        %p227 = pneg %p105
        %p228 = pneg %p134
        %p229 = pneg %p131
        %s230 = sand.u32 %s121, 1
        %s231 = scalar_lea.sflag [#allocation4], %s230
        %s232 = sand.u32 %s121, 1
        %s233 = smul.addr %s232, 8
        %s234 = scalar_lea.vmem [#allocation5], %s233
        %s235 = smul.u32 2, %s26
        %p236 = scmp.lt.s32.totalorder %s235, 1
        %s237 = scalar_select %p236, %s235, 1
        %s238 = smul.addr %s237, 8
        %s239 = scalar_lea.vmem %s0, %s238
        %s240 = smul.u32 2, %s26
        %p241 = scmp.lt.s32.totalorder %s25, 1
        %s242 = scalar_select %p241, %s25, 1
        %s243 = smul.addr %s242, 8
        %s244 = scalar_lea.vmem %s1, %s243
        %s245 = smul.u32 16, %s26
        %p246 = scmp.eq.s32.totalorder %s26, 0
        // Predicated region
        $region37: #{_lambda_.1} parent=31 // pred_check
          %p247 = pneg %p246
        $region38: #{_lambda_.1} parent=31 // pred_check_branch
          %249 = sbr.rel (%p247) target = $region40
        $region39: #{_lambda_.1} parent=31 // pred_region
          %v250 = vld [vmem:[%s244] sm:$0xff]
          %251 = vst [vmem:[%s234] sm:$0xff] %v250
        $region40: #{_lambda_.1} parent=31 // pred_fallthru
          _
        %v252 = vld [vmem:[%s239] sm:$0xff]
        %v253 = vld [vmem:[%s239 + $0x8] sm:$0xff]
        %v254 = vld [vmem:[%s234] sm:$0xff]
        %v255 = vld [vmem:[%s203] sm:$0xff]
        %v256 = vlaneseq
        %v257 = vshrl.u32 %v256, 7
        %v258 = vsub.s32 0, %v257
        %v259 = vrot.slane %v252, %v258
        %v260 = vmul.f32 %v255, %v259
        %v261 = vadd.f32 %v254, %v260
        %s262 = scalar_lea.vmem %s203, 8 [#allocation2]
        %v263 = vld [vmem:[%s262] sm:$0xff]
        %v264 = vlaneseq
        %v265 = vshrl.u32 %v264, 7
        %v266 = vsub.s32 1, %v265
        %v267 = vrot.slane %v252, %v266
        %v268 = vmul.f32 %v263, %v267
        %v269 = vadd.f32 %v261, %v268
        %s270 = scalar_lea.vmem %s203, 16 [#allocation2]
        %v271 = vld [vmem:[%s270] sm:$0xff]
        %v272 = vlaneseq
        %v273 = vshrl.u32 %v272, 7
        %v274 = vsub.s32 2, %v273
        %v275 = vrot.slane %v252, %v274
        %v276 = vmul.f32 %v271, %v275
        %v277 = vadd.f32 %v269, %v276
        %s278 = scalar_lea.vmem %s203, 24 [#allocation2]
        %v279 = vld [vmem:[%s278] sm:$0xff]
        %v280 = vlaneseq
        %v281 = vshrl.u32 %v280, 7
        %v282 = vsub.s32 3, %v281
        %v283 = vrot.slane %v252, %v282
        %v284 = vmul.f32 %v279, %v283
        %v285 = vadd.f32 %v277, %v284
        %s286 = scalar_lea.vmem %s203, 32 [#allocation2]
        %v287 = vld [vmem:[%s286] sm:$0xff]
        %v288 = vlaneseq
        %v289 = vshrl.u32 %v288, 7
        %v290 = vsub.s32 4, %v289
        %v291 = vrot.slane %v252, %v290
        %v292 = vmul.f32 %v287, %v291
        %v293 = vadd.f32 %v285, %v292
        %s294 = scalar_lea.vmem %s203, 40 [#allocation2]
        %v295 = vld [vmem:[%s294] sm:$0xff]
        %v296 = vlaneseq
        %v297 = vshrl.u32 %v296, 7
        %v298 = vsub.s32 5, %v297
        %v299 = vrot.slane %v252, %v298
        %v300 = vmul.f32 %v295, %v299
        %v301 = vadd.f32 %v293, %v300
        %s302 = scalar_lea.vmem %s203, 48 [#allocation2]
        %v303 = vld [vmem:[%s302] sm:$0xff]
        %v304 = vlaneseq
        %v305 = vshrl.u32 %v304, 7
        %v306 = vsub.s32 6, %v305
        %v307 = vrot.slane %v252, %v306
        %v308 = vmul.f32 %v303, %v307
        %v309 = vadd.f32 %v301, %v308
        %s310 = scalar_lea.vmem %s203, 56 [#allocation2]
        %v311 = vld [vmem:[%s310] sm:$0xff]
        %v312 = vlaneseq
        %v313 = vshrl.u32 %v312, 7
        %v314 = vsub.s32 7, %v313
        %v315 = vrot.slane %v252, %v314
        %v316 = vmul.f32 %v311, %v315
        %v317 = vadd.f32 %v309, %v316
        %s318 = scalar_lea.vmem %s203, 64 [#allocation2]
        %v319 = vld [vmem:[%s318] sm:$0xff]
        %v320 = vlaneseq
        %v321 = vshrl.u32 %v320, 7
        %v322 = vsub.s32 0, %v321
        %v323 = vrot.slane %v253, %v322
        %v324 = vmul.f32 %v319, %v323
        %v325 = vadd.f32 %v317, %v324
        %s326 = scalar_lea.vmem %s203, 72 [#allocation2]
        %v327 = vld [vmem:[%s326] sm:$0xff]
        %v328 = vlaneseq
        %v329 = vshrl.u32 %v328, 7
        %v330 = vsub.s32 1, %v329
        %v331 = vrot.slane %v253, %v330
        %v332 = vmul.f32 %v327, %v331
        %v333 = vadd.f32 %v325, %v332
        %s334 = scalar_lea.vmem %s203, 80 [#allocation2]
        %v335 = vld [vmem:[%s334] sm:$0xff]
        %v336 = vlaneseq
        %v337 = vshrl.u32 %v336, 7
        %v338 = vsub.s32 2, %v337
        %v339 = vrot.slane %v253, %v338
        %v340 = vmul.f32 %v335, %v339
        %v341 = vadd.f32 %v333, %v340
        %s342 = scalar_lea.vmem %s203, 88 [#allocation2]
        %v343 = vld [vmem:[%s342] sm:$0xff]
        %v344 = vlaneseq
        %v345 = vshrl.u32 %v344, 7
        %v346 = vsub.s32 3, %v345
        %v347 = vrot.slane %v253, %v346
        %v348 = vmul.f32 %v343, %v347
        %v349 = vadd.f32 %v341, %v348
        %s350 = scalar_lea.vmem %s203, 96 [#allocation2]
        %v351 = vld [vmem:[%s350] sm:$0xff]
        %v352 = vlaneseq
        %v353 = vshrl.u32 %v352, 7
        %v354 = vsub.s32 4, %v353
        %v355 = vrot.slane %v253, %v354
        %v356 = vmul.f32 %v351, %v355
        %v357 = vadd.f32 %v349, %v356
        %s358 = scalar_lea.vmem %s203, 104 [#allocation2]
        %v359 = vld [vmem:[%s358] sm:$0xff]
        %v360 = vlaneseq
        %v361 = vshrl.u32 %v360, 7
        %v362 = vsub.s32 5, %v361
        %v363 = vrot.slane %v253, %v362
        %v364 = vmul.f32 %v359, %v363
        %v365 = vadd.f32 %v357, %v364
        %s366 = scalar_lea.vmem %s203, 112 [#allocation2]
        %v367 = vld [vmem:[%s366] sm:$0xff]
        %v368 = vlaneseq
        %v369 = vshrl.u32 %v368, 7
        %v370 = vsub.s32 6, %v369
        %v371 = vrot.slane %v253, %v370
        %v372 = vmul.f32 %v367, %v371
        %v373 = vadd.f32 %v365, %v372
        %s374 = scalar_lea.vmem %s203, 120 [#allocation2]
        %v375 = vld [vmem:[%s374] sm:$0xff]
        %v376 = vlaneseq
        %v377 = vshrl.u32 %v376, 7
        %v378 = vsub.s32 7, %v377
        %v379 = vrot.slane %v253, %v378
        %v380 = vmul.f32 %v375, %v379
        %v381 = vadd.f32 %v373, %v380
        %382 = vst [vmem:[%s234] sm:$0xff] %v381
        %s383 = sand.u32 %s121, 1
        %s384 = scalar_lea.sflag [#allocation4], %s383
        %s385 = sand.u32 %s121, 1
        %s386 = smul.addr %s385, 8
        %s387 = scalar_lea.vmem [#allocation5], %s386
        // Predicated region
        $region41: #{_lambda_.1} parent=31 // pred_check
          %p388 = pneg %p131
        $region42: #{_lambda_.1} parent=31 // pred_check_branch
          %390 = sbr.rel (%p388) target = $region44
        $region43: #{_lambda_.1} parent=31 // pred_region
          %s392 = ssub.s32 128, 128
          %393 = vsyncadd %s384, %s392
          %s394 = smul.addr %s25, 128
          %s395 = scalar_lea.hbm %s4, %s394
          %s397 = sshll.u32 %s387, 4
          %s398 = int_to_ptr.vmem [resolvable:$true] %s397
          %400 = dma.vmem_to_hbm [thread:$0]  %s398, 128, %s395, %s384
        $region44: #{_lambda_.1} parent=31 // pred_fallthru
          _
      $region32: #{_lambda_.1} parent=5 // pred_fallthru
        _
      %p401 = scmp.le.s32.totalorder 2, %s16
      // Predicated region
      $region45: #{_lambda_.1} parent=5 // pred_check
        %p402 = pneg %p401
      $region46: #{_lambda_.1} parent=5 // pred_check_branch
        %404 = sbr.rel (%p402) target = $region48
      $region47: #{_lambda_.1} parent=5 // pred_region
        %s405 = ssub.s32 %s16, 2
        // Predicated region
        $region49: #{_lambda_.1} parent=47 // pred_check
          %p406 = pneg %p137
        $region50: #{_lambda_.1} parent=47 // pred_check_branch
          %408 = sbr.rel (%p406) target = $region52
        $region51: #{_lambda_.1} parent=47 // pred_region
          %s409 = sand.u32 %s122, 1
          %s410 = scalar_lea.sflag [#allocation4], %s409
          %s411 = sand.u32 %s122, 1
          %s412 = smul.addr %s411, 8
          %s413 = scalar_lea.vmem [#allocation5], %s412
          %414 = dma.done %s410, 128
        $region52: #{_lambda_.1} parent=47 // pred_fallthru
          _
      $region48: #{_lambda_.1} parent=5 // pred_fallthru
        _
    $region6: #{_lambda_.1} parent=1 // loop_footer
      %s20 = sadd.s32 1, %s16
    $region7: #{_lambda_.1} parent=1 // loop_footer_branch
      %15 = sbr.rel target = $region3
    $region8: #{_lambda_.1} parent=1 // loop_exit
      _
    %415 = vsyncpa [#allocation3], 1
    %s416 = scalar_lea.sflag [#allocation3], 1
    %417 = vsyncpa %s416, 1
    %418 = vsyncpa [#allocation4], 1
    %s419 = scalar_lea.sflag [#allocation4], 1
    %420 = vsyncpa %s419, 1

</llo_original>
